<compile_context>
chip_gen: v7x
topology: tpu7x:2x2x1
jax: 0.10.0
libtpu: 0.0.40
codegen_flags: <defaults>
</compile_context>

<pallas_src>
import jax
import jax.numpy as jnp
from jax.experimental import pallas as pl
from jax.experimental.pallas import tpu as pltpu

GAMMA = 1.5
ALPHA = 0.25
LANES = 128
MAX_BLOCK_ROWS = 8192     # (8192, 128) f32 = 4 MiB per input block
CHUNK_ROWS = 512          # in-kernel sub-chunk: bounds VMEM temporaries


def _cdiv(a, b):
    return -(-a // b)


def _round_down(a, b):
    return (a // b) * b


def _focal_elementwise(x, y):
    """Elementwise focal loss (gamma=1.5, alpha=0.25); exact for soft y in [0,1]."""
    # BCEWithLogitsLoss(reduction='none'), numerically stable:
    #   bce = max(x, 0) - x*y + log1p(exp(-|x|))
    e = jnp.exp(-jnp.abs(x))                       # one shared EUP exp
    bce = jnp.maximum(x, 0.0) - x * y + jnp.log1p(e)
    # sigmoid(x) reusing e:  1/(1+e) for x>=0,  e/(1+e) for x<0  (EUP vrcp).
    inv = pl.reciprocal(1.0 + e, approx=True)
    p = jnp.where(x >= 0.0, inv, e * inv)
    # t = 1 - p_t = 1 - (y*p + (1-y)*(1-p)) == y + p*(1 - 2y)    (fewer VPU ops)
    t = y + p * (1.0 - 2.0 * y)
    t = jnp.maximum(t, 0.0)                        # guard sqrt vs. approx-recip overshoot
    # alpha_factor = y*a + (1-y)*(1-a) == (1-a) + y*(2a - 1)
    af = (1.0 - ALPHA) + y * (2.0 * ALPHA - 1.0)
    # modulating = (1 - p_t) ** 1.5 == t * sqrt(t)   (avoids pow -> exp+log)
    if GAMMA == 1.5:
        mod = t * jnp.sqrt(t)
    else:
        mod = t ** GAMMA
    return bce * af * mod


def _fold_rows_to_8(loss):
    """(nrows, 128) f32 -> (8, 128) column partial sums (VPU/XLU only)."""
    nrows = loss.shape[0]
    if nrows % 8 == 0:
        return loss.reshape(-1, 8, LANES).sum(axis=0)
    # Tiny-input path (nrows < 8): park the column sums in sublane 0.
    s = jnp.broadcast_to(jnp.sum(loss, axis=0, keepdims=True), (8, LANES))
    sub = jax.lax.broadcasted_iota(jnp.int32, (8, LANES), 0)
    return jnp.where(sub == 0, s, 0.0)


def _make_kernel(block_rows, total, need_mask):
    """Build the kernel for a given (static) block size / element count."""
    total_rows = _cdiv(total, LANES)          # valid rows of the 2-D view
    lane_exact = (total % LANES == 0)
    n_full = block_rows // CHUNK_ROWS
    rem = block_rows % CHUNK_ROWS

    def _process(pred_ref, true_ref, base_row, row0, nrows):
        x = pred_ref[pl.ds(row0, nrows), :].astype(jnp.float32)
        y = true_ref[pl.ds(row0, nrows), :].astype(jnp.float32)
        loss = _focal_elementwise(x, y)
        if need_mask:
            row_ids = jax.lax.broadcasted_iota(jnp.int32, (nrows, LANES), 0)
            g_row = base_row + row0 + row_ids
            if lane_exact:
                valid = g_row < (total // LANES)
            else:
                lane_ids = jax.lax.broadcasted_iota(jnp.int32, (nrows, LANES), 1)
                valid = g_row * LANES + lane_ids < total
            loss = jnp.where(valid, loss, 0.0)   # select -> garbage/NaN becomes 0
        return _fold_rows_to_8(loss)

    def kernel(pred_ref, true_ref, partial_ref):
        base_row = pl.program_id(0) * block_rows
        acc = jnp.zeros((8, LANES), jnp.float32)

        if n_full > 0:
            # Clamp the trip count to the rows that are actually valid in this
            # block (nearly-empty boundary blocks skip garbage chunks; skipped
            # chunks would have been masked to zero anyway).
            rows_here = jnp.minimum(total_rows - base_row, block_rows)
            n_iter = jnp.minimum(n_full, (rows_here + CHUNK_ROWS - 1) // CHUNK_ROWS)

            def body(c, a):
                row0 = pl.multiple_of(c * CHUNK_ROWS, CHUNK_ROWS)
                return a + _process(pred_ref, true_ref, base_row, row0, CHUNK_ROWS)

            acc = jax.lax.fori_loop(0, n_iter, body, acc)

        if rem > 0:
            acc = acc + _process(pred_ref, true_ref, base_row,
                                 n_full * CHUNK_ROWS, rem)

        partial_ref[...] = acc

    return kernel


def focal_loss(pred, true, reduction="mean"):
    """Focal loss over same-shaped logits/targets (any shape, soft targets OK)."""
    assert pred.shape == true.shape
    total = int(pred.size)

    pred_flat = pred.reshape(-1)
    true_flat = true.reshape(-1)
    pad = (-total) % LANES
    if pad:
        # Only a lane pad (< 128 elements); the tail is masked in-kernel, so
        # the pad value is irrelevant (no sentinel-logit trick).
        pred_flat = jnp.pad(pred_flat, (0, pad))
        true_flat = jnp.pad(true_flat, (0, pad))
    rows = (total + pad) // LANES
    pred2d = pred_flat.reshape(rows, LANES)
    true2d = true_flat.reshape(rows, LANES)

    # Block never exceeds the array's row extent: either a multiple of 8, or
    # the full row count for tiny inputs -> the (8,128) rule is satisfied and
    # any partial boundary block is masked inside the kernel.
    if rows < 8:
        block_rows = rows
    else:
        block_rows = min(MAX_BLOCK_ROWS, _round_down(rows, 8))
    num_blocks = _cdiv(rows, block_rows)
    need_mask = (num_blocks * block_rows * LANES) != total

    kernel = _make_kernel(block_rows, total, need_mask)

    partials = pl.pallas_call(
        kernel,
        out_shape=jax.ShapeDtypeStruct((num_blocks * 8, LANES), jnp.float32),
        grid_spec=pltpu.PrefetchScalarGridSpec(
            num_scalar_prefetch=0,
            grid=(num_blocks,),
            in_specs=[
                pl.BlockSpec((block_rows, LANES), lambda i: (i, 0)),
                pl.BlockSpec((block_rows, LANES), lambda i: (i, 0)),
            ],
            out_specs=pl.BlockSpec((8, LANES), lambda i: (i, 0)),
        ),
        compiler_params=pltpu.CompilerParams(
            # Independent blocks -> megacore / v7x 2-TC sharding eligible.
            dimension_semantics=("parallel",),
            # 16 MiB of double-buffered input blocks + ~2 MiB chunked scratch:
            # 32 MiB is legal on every generation (raises v5e's 16 MiB default;
            # leaves >30 MiB headroom on v7x's 64 MiB/TC physical VMEM).
            vmem_limit_bytes=32 * 1024 * 1024,
        ),
    )(pred2d, true2d)

    loss_sum = jnp.sum(partials)
    if reduction == "mean":
        return loss_sum / jnp.float32(total)
    elif reduction == "sum":
        return loss_sum
    else:
        # TODO(synk): reduction='none' (elementwise map output) is not exposed.
        raise NotImplementedError("reduction='none' not implemented")


def _reference(pred, true):
    x = pred.astype(jnp.float32)
    y = true.astype(jnp.float32)
    bce = jnp.maximum(x, 0.0) - x * y + jnp.log1p(jnp.exp(-jnp.abs(x)))
    p = jax.nn.sigmoid(x)
    p_t = y * p + (1.0 - y) * (1.0 - p)
    af = y * ALPHA + (1.0 - y) * (1.0 - ALPHA)
    mf = (1.0 - p_t) ** GAMMA
    return jnp.mean(bce * af * mf)


if __name__ == "__main__":
    key = jax.random.PRNGKey(0)
    k1, k2, k3, k4, k5, k6 = jax.random.split(key, 6)

    # NCHW logits with binary targets: (B=2, C=4, H=16, W=16) -> total % 128 == 0,
    # no padding, no in-kernel masking.
    pred = jax.random.normal(k1, (2, 4, 16, 16), dtype=jnp.float32) * 2.0
    true = (jax.random.uniform(k2, (2, 4, 16, 16)) > 0.5).astype(jnp.float32)
    out = jax.block_until_ready(focal_loss(pred, true, reduction="mean"))
    ref = _reference(pred, true)
    # rtol accounts for the EUP approx-reciprocal used for sigmoid.
    assert jnp.allclose(out, ref, rtol=5e-3, atol=1e-5), (out, ref)

    # Ragged size (total % 128 != 0) with SOFT targets in [0,1]: exercises the
    # small lane-pad + element-granularity in-kernel masking and the general-y
    # (non-binary) math.
    pred2 = jax.random.normal(k3, (2, 3, 7, 5), dtype=jnp.float32) * 2.0
    true2 = jax.random.uniform(k4, (2, 3, 7, 5), dtype=jnp.float32)
    out2 = jax.block_until_ready(focal_loss(pred2, true2, reduction="mean"))
    ref2 = _reference(pred2, true2)
    assert jnp.allclose(out2, ref2, rtol=5e-3, atol=1e-5), (out2, ref2)

    # Larger ragged case: multi-block grid, chunked fori_loop path, partial
    # boundary block, element-granularity masking.
    pred3 = jax.random.normal(k5, (2, 4, 130, 70), dtype=jnp.float32) * 2.0
    true3 = (jax.random.uniform(k6, (2, 4, 130, 70)) > 0.5).astype(jnp.float32)
    out3 = jax.block_until_ready(focal_loss(pred3, true3, reduction="mean"))
    ref3 = _reference(pred3, true3)
    assert jnp.allclose(out3, ref3, rtol=5e-3, atol=1e-5), (out3, ref3)

    print("KERNEL_OK")
</pallas_src>

<mosaic_0001>
module attributes {stable_mosaic.version = 11 : i64} {
  func.func @kernel(%arg0: i32, %arg1: memref<16x128xf32, #tpu.memory_space<vmem>>, %arg2: memref<16x128xf32, #tpu.memory_space<vmem>>, %arg3: memref<8x128xf32, #tpu.memory_space<vmem>>) attributes {dimension_semantics = [#tpu.dimension_semantics<parallel>], iteration_bounds = array<i64: 1>, scalar_prefetch = 0 : i64, scratch_operands = 0 : i64, tpu.core_type = #tpu.core_type<tc>, window_params = [{transform_indices = @transform_0, window_bounds = array<i64: 16, 128>}, {transform_indices = @transform_1, window_bounds = array<i64: 16, 128>}, {transform_indices = @transform_2, window_bounds = array<i64: 8, 128>}]} {
    %cst = arith.constant 0.000000e+00 : f32
    %0 = vector.broadcast %cst : f32 to vector<8x128xf32>
    %c0 = arith.constant 0 : index
    %c0_0 = arith.constant 0 : index
    %1 = vector.load %arg1[%c0, %c0_0] : memref<16x128xf32, #tpu.memory_space<vmem>>, vector<16x128xf32>
    %c0_1 = arith.constant 0 : index
    %c0_2 = arith.constant 0 : index
    %2 = vector.load %arg2[%c0_1, %c0_2] : memref<16x128xf32, #tpu.memory_space<vmem>>, vector<16x128xf32>
    %3 = math.absf %1 : vector<16x128xf32>
    %cst_3 = arith.constant 0.000000e+00 : f32
    %4 = vector.broadcast %cst_3 : f32 to vector<16x128xf32>
    %5 = arith.subf %4, %3 : vector<16x128xf32>
    %6 = math.exp %5 : vector<16x128xf32>
    %cst_4 = arith.constant 0.000000e+00 : f32
    %7 = vector.broadcast %cst_4 : f32 to vector<16x128xf32>
    %8 = arith.maximumf %1, %7 : vector<16x128xf32>
    %9 = arith.mulf %1, %2 : vector<16x128xf32>
    %10 = arith.subf %8, %9 : vector<16x128xf32>
    %11 = math.log1p %6 : vector<16x128xf32>
    %12 = arith.addf %10, %11 : vector<16x128xf32>
    %cst_5 = arith.constant 1.000000e+00 : f32
    %13 = vector.broadcast %cst_5 : f32 to vector<16x128xf32>
    %14 = arith.addf %13, %6 : vector<16x128xf32>
    %15 = tpu.reciprocal %14 {approx = true} : vector<16x128xf32> -> vector<16x128xf32>
    %cst_6 = arith.constant 0.000000e+00 : f32
    %16 = vector.broadcast %cst_6 : f32 to vector<16x128xf32>
    %17 = arith.cmpf oge, %1, %16 : vector<16x128xf32>
    %18 = arith.mulf %6, %15 : vector<16x128xf32>
    %19 = arith.select %17, %15, %18 : vector<16x128xi1>, vector<16x128xf32>
    %cst_7 = arith.constant 2.000000e+00 : f32
    %20 = vector.broadcast %cst_7 : f32 to vector<16x128xf32>
    %21 = arith.mulf %20, %2 : vector<16x128xf32>
    %cst_8 = arith.constant 1.000000e+00 : f32
    %22 = vector.broadcast %cst_8 : f32 to vector<16x128xf32>
    %23 = arith.subf %22, %21 : vector<16x128xf32>
    %24 = arith.mulf %19, %23 : vector<16x128xf32>
    %25 = arith.addf %2, %24 : vector<16x128xf32>
    %cst_9 = arith.constant 0.000000e+00 : f32
    %26 = vector.broadcast %cst_9 : f32 to vector<16x128xf32>
    %27 = arith.maximumf %25, %26 : vector<16x128xf32>
    %cst_10 = arith.constant -5.000000e-01 : f32
    %28 = vector.broadcast %cst_10 : f32 to vector<16x128xf32>
    %29 = arith.mulf %2, %28 : vector<16x128xf32>
    %cst_11 = arith.constant 7.500000e-01 : f32
    %30 = vector.broadcast %cst_11 : f32 to vector<16x128xf32>
    %31 = arith.addf %30, %29 : vector<16x128xf32>
    %32 = math.sqrt %27 : vector<16x128xf32>
    %33 = arith.mulf %27, %32 : vector<16x128xf32>
    %34 = arith.mulf %12, %31 : vector<16x128xf32>
    %35 = arith.mulf %34, %33 : vector<16x128xf32>
    %36 = vector.shape_cast %35 : vector<16x128xf32> to vector<2x8x128xf32>
    %cst_12 = arith.constant dense<0.000000e+00> : vector<8x128xf32>
    %37 = vector.multi_reduction <add>, %36, %cst_12 [0] : vector<2x8x128xf32> to vector<8x128xf32>
    %38 = arith.addf %0, %37 : vector<8x128xf32>
    %c0_13 = arith.constant 0 : index
    %c0_14 = arith.constant 0 : index
    %39 = vector.load %arg3[%c0_13, %c0_14] : memref<8x128xf32, #tpu.memory_space<vmem>>, vector<8x128xf32>
    tpu.vector_store %arg3[%c0_13, %c0_14], %38 {strides = array<i32>} : memref<8x128xf32, #tpu.memory_space<vmem>>, vector<8x128xf32>,
    return
  }
  func.func @transform_0(%arg0: i32) -> (i32, i32) {
    %c0_i32 = arith.constant 0 : i32
    %c0_i32_0 = arith.constant 0 : i32
    return %arg0, %c0_i32 : i32, i32
  }
  func.func @transform_1(%arg0: i32) -> (i32, i32) {
    %c0_i32 = arith.constant 0 : i32
    %c0_i32_0 = arith.constant 0 : i32
    return %arg0, %c0_i32 : i32, i32
  }
  func.func @transform_2(%arg0: i32) -> (i32, i32) {
    %c0_i32 = arith.constant 0 : i32
    %c0_i32_0 = arith.constant 0 : i32
    return %arg0, %c0_i32 : i32, i32
  }
}

</mosaic_0001>

<llo_original>
// kernel: tpu_custom_call.1
$region0: #{tpu_custom_call.1}
  #allocation0 [shape = 'u32[]', space=smem, size = 0x4, offset = 0x4, fixed_abs, tag = 'smem constant byte address 0x4 - core index']
  #allocation1 [shape = 'u32[144,128]{1,0:T(1,128)}', space=vmem, size = 0x12000, scoped, tag = 'internal scratch']
  %s0 = inlined_call_operand.hbm [shape: f32[16,128], index: 0, kind: input, shape index: {}]
  %s1 = inlined_call_operand.hbm [shape: f32[16,128], index: 1, kind: input, shape index: {}]
  %s2 = inlined_call_operand.hbm [shape: f32[8,128], index: 2, kind: output, shape index: {}]
  %s3 = sld [smem:[#allocation0]]
  $region26: #{tpu_custom_call.1} parent=0
    _
  %s5 = ssub.s32 1, %s3
  %s6 = scalar_select 0, %s5, %s3
  $region1: #{tpu_custom_call.1} parent=0
    #allocation2 [shape = 'u8[8192]{0}', space=vmem, size = 0x2000, scoped, tag = 'input window, operand 0, single buffered']
    #allocation3 [shape = 's32[1]{0}', space=sflag, size = 0x4, scoped, tag = 'scoped memory for tpu_custom_call.1']
    #allocation4 [shape = 's32[1]{0}', space=sflag, size = 0x4, scoped, tag = 'scoped memory for tpu_custom_call.1']
    #allocation5 [shape = 'u8[8192]{0}', space=vmem, size = 0x2000, scoped, tag = 'input window, operand 1, single buffered']
    #allocation6 [shape = 's32[1]{0}', space=sflag, size = 0x4, scoped, tag = 'scoped memory for tpu_custom_call.1']
    #allocation7 [shape = 'u8[4096]{0}', space=vmem, size = 0x1000, scoped, tag = 'output window, operand 0, single buffered']
    %7 = vsyncpa [#allocation3], 0
    %8 = vsyncpa [#allocation6], 0
    %9 = vsyncpa [#allocation4], 0
    // Predicated region
    $region2: #{tpu_custom_call.1} parent=1 // pred_check
      _
    $region3: #{tpu_custom_call.1} parent=1 // pred_check_branch
      %11 = sbr.rel (0) target = $region5
    $region4: #{tpu_custom_call.1} parent=1 // pred_region
      %s13 = ssub.s32 256, 256
      %14 = vsyncadd [#allocation3], %s13
      %s15 = sshll.u32 [#allocation2], 4
      %s16 = int_to_ptr.vmem [resolvable:$true] %s15
      %21 = dma.hbm_to_vmem [thread:$0]  %s0, 256, %s16, [#allocation3], 128, 128, 8
    $region5: #{tpu_custom_call.1} parent=1 // pred_fallthru
      _
    // Predicated region
    $region6: #{tpu_custom_call.1} parent=1 // pred_check
      _
    $region7: #{tpu_custom_call.1} parent=1 // pred_check_branch
      %23 = sbr.rel (0) target = $region9
    $region8: #{tpu_custom_call.1} parent=1 // pred_region
      %s25 = ssub.s32 256, 256
      %26 = vsyncadd [#allocation6], %s25
      %s27 = sshll.u32 [#allocation5], 4
      %s28 = int_to_ptr.vmem [resolvable:$true] %s27
      %33 = dma.hbm_to_vmem [thread:$0]  %s1, 256, %s28, [#allocation6], 128, 128, 8
    $region9: #{tpu_custom_call.1} parent=1 // pred_fallthru
      _
    // Predicated region
    $region10: #{tpu_custom_call.1} parent=1 // pred_check
      _
    $region11: #{tpu_custom_call.1} parent=1 // pred_check_branch
      %35 = sbr.rel (0) target = $region13
    $region12: #{tpu_custom_call.1} parent=1 // pred_region
      %36 = dma.done [#allocation3], 256
    $region13: #{tpu_custom_call.1} parent=1 // pred_fallthru
      _
    // Predicated region
    $region14: #{tpu_custom_call.1} parent=1 // pred_check
      _
    $region15: #{tpu_custom_call.1} parent=1 // pred_check_branch
      %38 = sbr.rel (0) target = $region17
    $region16: #{tpu_custom_call.1} parent=1 // pred_region
      %39 = dma.done [#allocation6], 256
    $region17: #{tpu_custom_call.1} parent=1 // pred_fallthru
      _
    %v40 = vld [vmem:[#allocation2] sm:$0xff]
    %v41 = vld [vmem:[#allocation2 + $0x8] sm:$0xff]
    %v42 = vld [vmem:[#allocation5] sm:$0xff]
    %v43 = vld [vmem:[#allocation5 + $0x8] sm:$0xff]
    %v44 = vand.u32 2147483647, %v40
    %v45 = vand.u32 2147483647, %v41
    %v46 = vsub.f32 0.0, %v44
    %v47 = vsub.f32 0.0, %v45
    %v48 = vmul.f32 %v46, 1.442695
    %v49 = vpow.pop %v48
    %v50 = vmul.f32 %v47, 1.442695
    %v51 = vpow.pop %v50
    %v52 = vmax.f32 %v40, 0.0
    %v53 = vmax.f32 %v41, 0.0
    %v54 = vmul.f32 %v40, %v42
    %v55 = vmul.f32 %v41, %v43
    %v56 = vsub.f32 %v52, %v54
    %v57 = vsub.f32 %v53, %v55
    %v58 = vadd.f32 %v49, 1.0
    %v59 = vlog2.pop %v58
    %v60 = vmul.f32 %v59, 0.6931472
    %v61 = vmul.f32 -0.5, %v49
    %v62 = vadd.f32 %v61, 1.0
    %v63 = vmul.f32 %v62, %v49
    %v64 = vand.u32 2147483647, %v49
    %vm65 = vcmp.lt.f32.partialorder %v64, 0.0004427343
    %v66 = vsel %vm65, %v63, %v60
    %v67 = vadd.f32 %v51, 1.0
    %v68 = vlog2.pop %v67
    %v69 = vmul.f32 %v68, 0.6931472
    %v70 = vmul.f32 -0.5, %v51
    %v71 = vadd.f32 %v70, 1.0
    %v72 = vmul.f32 %v71, %v51
    %v73 = vand.u32 2147483647, %v51
    %vm74 = vcmp.lt.f32.partialorder %v73, 0.0004427343
    %v75 = vsel %vm74, %v72, %v69
    %v76 = vadd.f32 %v56, %v66
    %v77 = vadd.f32 %v57, %v75
    %v78 = vadd.f32 %v49, 1.0
    %v79 = vadd.f32 %v51, 1.0
    %v80 = vrcp.pop %v78
    %v81 = vrcp.pop %v79
    %vm82 = vcmp.ge.f32.partialorder %v40, 0.0
    %vm83 = vcmp.ge.f32.partialorder %v41, 0.0
    %v84 = vmul.f32 %v49, %v80
    %v85 = vmul.f32 %v51, %v81
    %v86 = vsel %vm82, %v80, %v84
    %v87 = vsel %vm83, %v81, %v85
    %v88 = vmul.f32 %v42, 2.0
    %v89 = vmul.f32 %v43, 2.0
    %v90 = vsub.f32 1.0, %v88
    %v91 = vsub.f32 1.0, %v89
    %v92 = vmul.f32 %v86, %v90
    %v93 = vmul.f32 %v87, %v91
    %v94 = vadd.f32 %v42, %v92
    %v95 = vadd.f32 %v43, %v93
    %v96 = vmax.f32 %v94, 0.0
    %v97 = vmax.f32 %v95, 0.0
    %v98 = vmul.f32 %v42, -0.5
    %v99 = vmul.f32 %v43, -0.5
    %v100 = vadd.f32 %v98, 0.75
    %v101 = vadd.f32 %v99, 0.75
    %v102 = vrsqrt.pop %v96
    %v103 = vmul.f32 %v96, %v102
    %vm104 = vcmp.eq.f32.partialorder %v96, inf
    %v105 = vsel %vm104, %v96, %v103
    %vm106 = vcmp.eq.f32.partialorder %v96, 0.0
    %v107 = vand.u32 %v96, 2147483648
    %v108 = vsel %vm106, %v107, %v105
    %v109 = vrsqrt.pop %v97
    %v110 = vmul.f32 %v97, %v109
    %vm111 = vcmp.eq.f32.partialorder %v97, inf
    %v112 = vsel %vm111, %v97, %v110
    %vm113 = vcmp.eq.f32.partialorder %v97, 0.0
    %v114 = vand.u32 %v97, 2147483648
    %v115 = vsel %vm113, %v114, %v112
    %v116 = vmul.f32 %v96, %v108
    %v117 = vmul.f32 %v97, %v115
    %v118 = vmul.f32 %v76, %v100
    %v119 = vmul.f32 %v77, %v101
    %v120 = vmul.f32 %v118, %v116
    %v121 = vmul.f32 %v119, %v117
    %v122 = vadd.f32 %v120, %v121
    %v123 = vadd.f32 %v122, 0.0
    %124 = vst [vmem:[#allocation7] sm:$0xff] %v123
    // Predicated region
    $region18: #{tpu_custom_call.1} parent=1 // pred_check
      _
    $region19: #{tpu_custom_call.1} parent=1 // pred_check_branch
      %126 = sbr.rel (0) target = $region21
    $region20: #{tpu_custom_call.1} parent=1 // pred_region
      %s128 = ssub.s32 128, 128
      %129 = vsyncadd [#allocation4], %s128
      %s131 = sshll.u32 [#allocation7], 4
      %s132 = int_to_ptr.vmem [resolvable:$true] %s131
      %134 = dma.vmem_to_hbm [thread:$0]  %s132, 128, %s2, [#allocation4]
    $region21: #{tpu_custom_call.1} parent=1 // pred_fallthru
      _
    // Predicated region
    $region22: #{tpu_custom_call.1} parent=1 // pred_check
      _
    $region23: #{tpu_custom_call.1} parent=1 // pred_check_branch
      %136 = sbr.rel (0) target = $region25
    $region24: #{tpu_custom_call.1} parent=1 // pred_region
      %137 = dma.done [#allocation4], 128
    $region25: #{tpu_custom_call.1} parent=1 // pred_fallthru
      _
    %138 = vsyncpa [#allocation3], 1
    %139 = vsyncpa [#allocation6], 1
    %140 = vsyncpa [#allocation4], 1

</llo_original>
